<compile_context>
chip_gen: v5e
topology: v5e:2x2
jax: 0.10.0
libtpu: 0.0.40
codegen_flags: <defaults>
</compile_context>

<pallas_src>
import jax
import jax.numpy as jnp
from jax.experimental import pallas as pl
from jax.experimental.pallas import tpu as pltpu


def _round_up(x, m):
    return ((x + m - 1) // m) * m


def _choose_batch_tile(B, cap=4096, min_tiles=2):
    """Batch rows per grid step.

    Multiple of 8, large enough to amortize the ~0.35us per-grid-step
    overhead, capped so VMEM stays small, and >= min_tiles tiles when B is
    large so the 'parallel' grid axis can split across v7x's two TensorCores.
    """
    if B <= 1024:
        return _round_up(B, 8)          # single tile, no wasted rows
    per_tile = -(-B // min_tiles)       # ceil-div: at least min_tiles tiles
    return min(_round_up(per_tile, 512), cap)


def _default_act_dtype():
    """bf16 activations on chips with a bf16 VPU/EUP (v6e/v7x), f32 elsewhere."""
    try:
        kind = jax.devices()[0].device_kind.lower()
    except Exception:
        kind = ""
    if ("v6" in kind) or ("v7" in kind) or ("7x" in kind):
        return jnp.bfloat16
    return jnp.float32


def _make_value_net_kernel(num_layers, act_dtype):
    """Fused MLP kernel, batch on the lane axis: tanh hidden layers + linear."""

    def kernel(*refs):
        x_ref = refs[0]          # (tb, state_dim) f32 batch tile
        o_ref = refs[-1]         # (1, 1, tb) f32 output block
        wb = refs[1:-1]

        # Cast in-kernel (VPU, essentially free) and put batch on lanes.
        # The one-time f32 (tb, state_dim) -> (state_dim, tb) transpose rides
        # the otherwise-idle XLU slot.
        h = x_ref[...].T.astype(jnp.bfloat16)            # (state_dim, tb)

        out = None
        for li in range(num_layers):
            w_ref = wb[2 * li]        # (out, in) bf16, PyTorch nn.Linear layout
            b_ref = wb[2 * li + 1]    # (out, 1)  f32
            # MXU in bf16 with f32 accumulation; N = tb keeps lanes full.
            acc = jnp.dot(w_ref[...], h, preferred_element_type=jnp.float32)
            acc = acc + b_ref[...]                       # (out, tb) f32
            if li < num_layers - 1:
                if act_dtype == jnp.bfloat16:
                    # v6e/v7x: bf16 EUP tanh, half the activation vregs.
                    h = jnp.tanh(acc.astype(jnp.bfloat16))
                else:
                    # v5e: no bf16 VPU/EUP -> keep tanh/bias math in f32.
                    h = jnp.tanh(acc).astype(jnp.bfloat16)
            else:
                out = acc                                # (1, tb) f32

        # Lane-dense store: (1, tb) -> (1, 1, tb) block (tb/128 stores instead
        # of tb/8 masked column stores).
        o_ref[...] = out.reshape(o_ref.shape).astype(o_ref.dtype)

    return kernel


def value_net_forward(x, params, *, tile_b=4096, act_dtype=None):
    """Fused ValueNet forward: tanh hidden layers + final linear -> (B, 1)."""
    assert len(params) % 2 == 0
    num_layers = len(params) // 2
    B, state_dim = x.shape

    if act_dtype is None:
        act_dtype = _default_act_dtype()

    tb = _choose_batch_tile(B, cap=tile_b)
    num_tiles = pl.cdiv(B, tb)

    x_spec = pl.BlockSpec((tb, state_dim), lambda i: (i, 0))
    # Weights / biases: full blocks, constant index map -> resident in VMEM
    # across every batch tile (no per-step re-DMA). (pl.Buffered(1) would also
    # drop their redundant second pipeline buffer, but the ~10 KiB saved is
    # negligible, so we keep the default for maximum compile portability.)
    wb_specs = [pl.BlockSpec(p.shape, lambda i: (0, 0)) for p in params]
    out_spec = pl.BlockSpec((1, 1, tb), lambda i: (i, 0, 0))

    out = pl.pallas_call(
        _make_value_net_kernel(num_layers, act_dtype),
        out_shape=jax.ShapeDtypeStruct((num_tiles, 1, tb), jnp.float32),
        grid=(num_tiles,),
        in_specs=[x_spec, *wb_specs],
        out_specs=out_spec,
        compiler_params=pltpu.CompilerParams(
            # Batch tiles are independent -> shard across TCs on v7x.
            dimension_semantics=("parallel",),
        ),
    )(x, *params)

    # (num_tiles, 1, tb) is batch-major; entries past B (garbage rows of the
    # partial last tile) are sliced off. The reshape is contiguous -> free.
    return out.reshape(-1)[:B].reshape(B, 1)


def init_params(key, state_dim, hidden_sizes=(64, 64)):
    """PyTorch-style init (uniform +-1/sqrt(fan_in)), ValueNet final-layer scaling.

    Weights are kept in PyTorch nn.Linear layout (out_features, in_features)
    and stored bf16 (MXU operands); biases are (out_features, 1) f32.
    """
    dims = (state_dim, *hidden_sizes, 1)
    n = len(dims) - 1
    ks = jax.random.split(key, 2 * n)
    params = []
    for li in range(n):
        fan_in, fan_out = dims[li], dims[li + 1]
        bound = 1.0 / float(fan_in) ** 0.5
        w = jax.random.uniform(ks[2 * li], (fan_out, fan_in), jnp.float32, -bound, bound)
        b = jax.random.uniform(ks[2 * li + 1], (fan_out, 1), jnp.float32, -bound, bound)
        if li == n - 1:
            # ValueNet: self.final.weight.data.mul_(0.1); self.final.bias.data.mul_(0.0)
            w = w * 0.1
            b = b * 0.0
        params.extend([w.astype(jnp.bfloat16), b])
    return tuple(params)


def value_net_reference_mixed(x, params, act_dtype):
    """Pure-JAX reference mirroring the kernel's mixed precision."""
    n = len(params) // 2
    h = x.astype(jnp.bfloat16)
    for li in range(n):
        w = params[2 * li]                       # (out, in) bf16
        b = params[2 * li + 1].reshape(1, -1)    # (1, out)  f32
        acc = jnp.dot(h, w.T, preferred_element_type=jnp.float32) + b
        if li < n - 1:
            if act_dtype == jnp.bfloat16:
                h = jnp.tanh(acc.astype(jnp.bfloat16))
            else:
                h = jnp.tanh(acc).astype(jnp.bfloat16)
        else:
            h = acc
    return h


def value_net_reference_f32(x, params):
    """Full-f32 reference (semantic check of the original module's math)."""
    n = len(params) // 2
    h = x
    for li in range(n):
        w = params[2 * li].astype(jnp.float32)   # (out, in)
        b = params[2 * li + 1].reshape(1, -1)    # (1, out)
        h = h @ w.T + b
        if li < n - 1:
            h = jnp.tanh(h)
    return h


if __name__ == "__main__":
    # Small shapes consistent with ValueNet's forward: (batch, state_dim) -> (batch, 1)
    batch, state_dim = 16, 24
    hidden_sizes = (64, 64)   # module default HIDDEN_SIZES

    key = jax.random.PRNGKey(0)
    k_params, k_x = jax.random.split(key)
    params = init_params(k_params, state_dim, hidden_sizes)
    x = jax.random.normal(k_x, (batch, state_dim), jnp.float32)

    act_dtype = _default_act_dtype()
    out = value_net_forward(x, params, act_dtype=act_dtype)
    out = jax.block_until_ready(out)

    assert out.shape == (batch, 1)
    ref_mixed = value_net_reference_mixed(x, params, act_dtype)
    ref_f32 = value_net_reference_f32(x, params)
    assert jnp.allclose(out, ref_mixed, atol=5e-3, rtol=2e-2), (
        float(jnp.max(jnp.abs(out - ref_mixed))))
    assert jnp.allclose(out, ref_f32, atol=3e-2, rtol=3e-2), (
        float(jnp.max(jnp.abs(out - ref_f32))))

    print("KERNEL_OK")
</pallas_src>

<mosaic_0001>
module attributes {stable_mosaic.version = 11 : i64} {
  func.func @kernel(%arg0: i32, %arg1: memref<16x24xf32, #tpu.memory_space<vmem>>, %arg2: memref<64x24xbf16, #tpu.memory_space<vmem>>, %arg3: memref<64x1xf32, #tpu.memory_space<vmem>>, %arg4: memref<64x64xbf16, #tpu.memory_space<vmem>>, %arg5: memref<64x1xf32, #tpu.memory_space<vmem>>, %arg6: memref<1x64xbf16, #tpu.memory_space<vmem>>, %arg7: memref<1x1xf32, #tpu.memory_space<vmem>>, %arg8: memref<1x1x16xf32, #tpu.memory_space<vmem>>) attributes {dimension_semantics = [#tpu.dimension_semantics<parallel>], iteration_bounds = array<i64: 1>, scalar_prefetch = 0 : i64, scratch_operands = 0 : i64, tpu.core_type = #tpu.core_type<tc>, window_params = [{transform_indices = @transform_0, window_bounds = array<i64: 16, 24>}, {pipeline_mode = #tpu.pipeline_mode<synchronous>, transform_indices = @transform_1, window_bounds = array<i64: 64, 24>}, {pipeline_mode = #tpu.pipeline_mode<synchronous>, transform_indices = @transform_2, window_bounds = array<i64: 64, 1>}, {pipeline_mode = #tpu.pipeline_mode<synchronous>, transform_indices = @transform_3, window_bounds = array<i64: 64, 64>}, {pipeline_mode = #tpu.pipeline_mode<synchronous>, transform_indices = @transform_4, window_bounds = array<i64: 64, 1>}, {pipeline_mode = #tpu.pipeline_mode<synchronous>, transform_indices = @transform_5, window_bounds = array<i64: 1, 64>}, {pipeline_mode = #tpu.pipeline_mode<synchronous>, transform_indices = @transform_6, window_bounds = array<i64: 1, 1>}, {transform_indices = @transform_7, window_bounds = array<i64: 1, 1, 16>}]} {
    %c0 = arith.constant 0 : index
    %c0_0 = arith.constant 0 : index
    %0 = vector.load %arg1[%c0, %c0_0] : memref<16x24xf32, #tpu.memory_space<vmem>>, vector<16x24xf32>
    %1 = tpu.transpose %0, [1, 0] : vector<16x24xf32> -> vector<24x16xf32>
    %2 = arith.truncf %1 : vector<24x16xf32> to vector<24x16xbf16>
    %c0_1 = arith.constant 0 : index
    %c0_2 = arith.constant 0 : index
    %3 = vector.load %arg2[%c0_1, %c0_2] : memref<64x24xbf16, #tpu.memory_space<vmem>>, vector<64x24xbf16>
    %cst = arith.constant dense<0.000000e+00> : vector<64x16xf32>
    %4 = tpu.matmul %3, %2, %cst {dimension_numbers = #tpu.dot_dimension_numbers<[1], [0], [0], [1], [0, 0, 1, 1], [], []>} : vector<64x24xbf16>, vector<24x16xbf16>, vector<64x16xf32> -> vector<64x16xf32>
    %c0_3 = arith.constant 0 : index
    %c0_4 = arith.constant 0 : index
    %5 = vector.load %arg3[%c0_3, %c0_4] : memref<64x1xf32, #tpu.memory_space<vmem>>, vector<64x1xf32>
    %6 = vector.broadcast %5 : vector<64x1xf32> to vector<64x16xf32>
    %7 = arith.addf %4, %6 : vector<64x16xf32>
    %8 = math.tanh %7 : vector<64x16xf32>
    %9 = arith.truncf %8 : vector<64x16xf32> to vector<64x16xbf16>
    %c0_5 = arith.constant 0 : index
    %c0_6 = arith.constant 0 : index
    %10 = vector.load %arg4[%c0_5, %c0_6] : memref<64x64xbf16, #tpu.memory_space<vmem>>, vector<64x64xbf16>
    %cst_7 = arith.constant dense<0.000000e+00> : vector<64x16xf32>
    %11 = tpu.matmul %10, %9, %cst_7 {dimension_numbers = #tpu.dot_dimension_numbers<[1], [0], [0], [1], [0, 0, 1, 1], [], []>} : vector<64x64xbf16>, vector<64x16xbf16>, vector<64x16xf32> -> vector<64x16xf32>
    %c0_8 = arith.constant 0 : index
    %c0_9 = arith.constant 0 : index
    %12 = vector.load %arg5[%c0_8, %c0_9] : memref<64x1xf32, #tpu.memory_space<vmem>>, vector<64x1xf32>
    %13 = vector.broadcast %12 : vector<64x1xf32> to vector<64x16xf32>
    %14 = arith.addf %11, %13 : vector<64x16xf32>
    %15 = math.tanh %14 : vector<64x16xf32>
    %16 = arith.truncf %15 : vector<64x16xf32> to vector<64x16xbf16>
    %c0_10 = arith.constant 0 : index
    %c0_11 = arith.constant 0 : index
    %17 = vector.load %arg6[%c0_10, %c0_11] : memref<1x64xbf16, #tpu.memory_space<vmem>>, vector<1x64xbf16>
    %cst_12 = arith.constant dense<0.000000e+00> : vector<1x16xf32>
    %18 = tpu.matmul %17, %16, %cst_12 {dimension_numbers = #tpu.dot_dimension_numbers<[1], [0], [0], [1], [0, 0, 1, 1], [], []>} : vector<1x64xbf16>, vector<64x16xbf16>, vector<1x16xf32> -> vector<1x16xf32>
    %c0_13 = arith.constant 0 : index
    %c0_14 = arith.constant 0 : index
    %19 = vector.load %arg7[%c0_13, %c0_14] : memref<1x1xf32, #tpu.memory_space<vmem>>, vector<1x1xf32>
    %20 = vector.broadcast %19 : vector<1x1xf32> to vector<1x16xf32>
    %21 = arith.addf %18, %20 : vector<1x16xf32>
    %22 = vector.shape_cast %21 : vector<1x16xf32> to vector<1x1x16xf32>
    %c0_15 = arith.constant 0 : index
    %c0_16 = arith.constant 0 : index
    %c0_17 = arith.constant 0 : index
    %23 = vector.load %arg8[%c0_15, %c0_16, %c0_17] : memref<1x1x16xf32, #tpu.memory_space<vmem>>, vector<1x1x16xf32>
    tpu.vector_store %arg8[%c0_15, %c0_16, %c0_17], %22 {strides = array<i32>} : memref<1x1x16xf32, #tpu.memory_space<vmem>>, vector<1x1x16xf32>,
    return
  }
  func.func @transform_0(%arg0: i32) -> (i32, i32) {
    %c0_i32 = arith.constant 0 : i32
    %c0_i32_0 = arith.constant 0 : i32
    return %arg0, %c0_i32 : i32, i32
  }
  func.func @transform_1(%arg0: i32) -> (i32, i32) {
    %c0_i32 = arith.constant 0 : i32
    %c0_i32_0 = arith.constant 0 : i32
    %c0_i32_1 = arith.constant 0 : i32
    return %c0_i32, %c0_i32_0 : i32, i32
  }
  func.func @transform_2(%arg0: i32) -> (i32, i32) {
    %c0_i32 = arith.constant 0 : i32
    %c0_i32_0 = arith.constant 0 : i32
    %c0_i32_1 = arith.constant 0 : i32
    return %c0_i32, %c0_i32_0 : i32, i32
  }
  func.func @transform_3(%arg0: i32) -> (i32, i32) {
    %c0_i32 = arith.constant 0 : i32
    %c0_i32_0 = arith.constant 0 : i32
    %c0_i32_1 = arith.constant 0 : i32
    return %c0_i32, %c0_i32_0 : i32, i32
  }
  func.func @transform_4(%arg0: i32) -> (i32, i32) {
    %c0_i32 = arith.constant 0 : i32
    %c0_i32_0 = arith.constant 0 : i32
    %c0_i32_1 = arith.constant 0 : i32
    return %c0_i32, %c0_i32_0 : i32, i32
  }
  func.func @transform_5(%arg0: i32) -> (i32, i32) {
    %c0_i32 = arith.constant 0 : i32
    %c0_i32_0 = arith.constant 0 : i32
    %c0_i32_1 = arith.constant 0 : i32
    return %c0_i32, %c0_i32_0 : i32, i32
  }
  func.func @transform_6(%arg0: i32) -> (i32, i32) {
    %c0_i32 = arith.constant 0 : i32
    %c0_i32_0 = arith.constant 0 : i32
    %c0_i32_1 = arith.constant 0 : i32
    return %c0_i32, %c0_i32_0 : i32, i32
  }
  func.func @transform_7(%arg0: i32) -> (i32, i32, i32) {
    %c0_i32 = arith.constant 0 : i32
    %c0_i32_0 = arith.constant 0 : i32
    %c0_i32_1 = arith.constant 0 : i32
    return %arg0, %c0_i32, %c0_i32_0 : i32, i32, i32
  }
}

</mosaic_0001>

<llo_original>
// kernel: tpu_custom_call.1
$region0: #{tpu_custom_call.1}
  #allocation0 [shape = 'u32[]', space=smem, size = 0x4, offset = 0x4, fixed_abs, tag = 'smem constant byte address 0x4 - core index']
  #allocation1 [shape = 'u32[72,128]{1,0:T(1,128)}', space=vmem, size = 0x9000, scoped, tag = 'internal scratch']
  #allocation2 [shape = 'f32[1,1]{1,0:T(1,128)S(1)}', space=vmem, size = 0x200, scoped, tag = 'scoped memory for tpu_custom_call.1']
  %s0 = inlined_call_operand.vmem [shape: f32[16,24], index: 0, kind: input, shape index: {}]
  %s1 = inlined_call_operand.vmem [shape: bf16[64,24], index: 1, kind: input, shape index: {}]
  %s2 = inlined_call_operand.vmem [shape: f32[64,1], index: 2, kind: input, shape index: {}]
  %s3 = inlined_call_operand.vmem [shape: bf16[64,64], index: 3, kind: input, shape index: {}]
  %s4 = inlined_call_operand.vmem [shape: f32[64,1], index: 4, kind: input, shape index: {}]
  %s5 = inlined_call_operand.vmem [shape: bf16[1,64], index: 5, kind: input, shape index: {}]
  %s6 = inlined_call_operand.<no memory space> [shape: f32[1,1], index: 6, kind: input, shape index: {}]
  %s7 = inlined_call_operand.hbm [shape: f32[1,1,16], index: 7, kind: output, shape index: {}]
  %s8 = sld [smem:[#allocation0]]
  $region38: #{tpu_custom_call.1} parent=0
    _
  %s10 = ssub.s32 1, %s8
  %s11 = scalar_select 0, %s10, %s8
  %v12 = vstv %s6
  %13 = vst [vmem:[#allocation2] sm:$0x1] %v12
  $region1: #{tpu_custom_call.1} parent=0
    #allocation3 [shape = 'u8[512]{0}', space=vmem, size = 0x400, scoped, tag = 'output window, operand 0, single buffered']
    #allocation4 [shape = 's32[1]{0}', space=sflag, size = 0x4, scoped, tag = 'scoped memory for tpu_custom_call.1']
    %14 = vsyncpa [#allocation4], 0
    // Predicated region
    $region2: #{tpu_custom_call.1} parent=1 // pred_check
      _
    $region3: #{tpu_custom_call.1} parent=1 // pred_check_branch
      %16 = sbr.rel (0) target = $region5
    $region4: #{tpu_custom_call.1} parent=1 // pred_region
      _
    $region5: #{tpu_custom_call.1} parent=1 // pred_fallthru
      _
    // Predicated region
    $region6: #{tpu_custom_call.1} parent=1 // pred_check
      _
    $region7: #{tpu_custom_call.1} parent=1 // pred_check_branch
      %18 = sbr.rel (0) target = $region9
    $region8: #{tpu_custom_call.1} parent=1 // pred_region
      _
    $region9: #{tpu_custom_call.1} parent=1 // pred_fallthru
      _
    // Predicated region
    $region10: #{tpu_custom_call.1} parent=1 // pred_check
      _
    $region11: #{tpu_custom_call.1} parent=1 // pred_check_branch
      %20 = sbr.rel (0) target = $region13
    $region12: #{tpu_custom_call.1} parent=1 // pred_region
      _
    $region13: #{tpu_custom_call.1} parent=1 // pred_fallthru
      _
    // Predicated region
    $region14: #{tpu_custom_call.1} parent=1 // pred_check
      _
    $region15: #{tpu_custom_call.1} parent=1 // pred_check_branch
      %22 = sbr.rel (0) target = $region17
    $region16: #{tpu_custom_call.1} parent=1 // pred_region
      _
    $region17: #{tpu_custom_call.1} parent=1 // pred_fallthru
      _
    // Predicated region
    $region18: #{tpu_custom_call.1} parent=1 // pred_check
      _
    $region19: #{tpu_custom_call.1} parent=1 // pred_check_branch
      %24 = sbr.rel (0) target = $region21
    $region20: #{tpu_custom_call.1} parent=1 // pred_region
      _
    $region21: #{tpu_custom_call.1} parent=1 // pred_fallthru
      _
    // Predicated region
    $region22: #{tpu_custom_call.1} parent=1 // pred_check
      _
    $region23: #{tpu_custom_call.1} parent=1 // pred_check_branch
      %26 = sbr.rel (0) target = $region25
    $region24: #{tpu_custom_call.1} parent=1 // pred_region
      _
    $region25: #{tpu_custom_call.1} parent=1 // pred_fallthru
      _
    // Predicated region
    $region26: #{tpu_custom_call.1} parent=1 // pred_check
      _
    $region27: #{tpu_custom_call.1} parent=1 // pred_check_branch
      %28 = sbr.rel (0) target = $region29
    $region28: #{tpu_custom_call.1} parent=1 // pred_region
      _
    $region29: #{tpu_custom_call.1} parent=1 // pred_fallthru
      _
    %v30 = vld [vmem:[%s0] sm:$0xff]
    %v31 = vld [vmem:[%s0 + $0x8] sm:$0xff]
    %32 = vxpose.xlu0.b32.start [1/16] %v30, 128
    %33 = vxpose.xlu0.b32.cont [2/16] %v31, 128
    %34 = vxpose.xlu0.b32.cont [3/16] 0.0, 128
    %35 = vxpose.xlu0.b32.cont [4/16] 0.0, 128
    %36 = vxpose.xlu0.b32.cont [5/16] 0.0, 128
    %37 = vxpose.xlu0.b32.cont [6/16] 0.0, 128
    %38 = vxpose.xlu0.b32.cont [7/16] 0.0, 128
    %39 = vxpose.xlu0.b32.cont [8/16] 0.0, 128
    %40 = vxpose.xlu0.b32.cont [9/16] 0.0, 128
    %41 = vxpose.xlu0.b32.cont [10/16] 0.0, 128
    %42 = vxpose.xlu0.b32.cont [11/16] 0.0, 128
    %43 = vxpose.xlu0.b32.cont [12/16] 0.0, 128
    %44 = vxpose.xlu0.b32.cont [13/16] 0.0, 128
    %45 = vxpose.xlu0.b32.cont [14/16] 0.0, 128
    %46 = vxpose.xlu0.b32.cont [15/16] 0.0, 128
    %47 = vxpose.xlu0.b32.end [16/16] 0.0, 128
    %v48 = vpop.trf.xlu0
    %v49 = vpop.trf.xlu0
    %v50 = vpop.trf.xlu0
    %v51 = vpop.trf.xlu0
    %v52 = vpop.trf.xlu0
    %v53 = vpop.trf.xlu0
    %v54 = vpop.trf.xlu0
    %v55 = vpop.trf.xlu0
    %v56 = vpop.trf.xlu0
    %v57 = vpop.trf.xlu0
    %v58 = vpop.trf.xlu0
    %v59 = vpop.trf.xlu0
    %v60 = vpop.trf.xlu0
    %v61 = vpop.trf.xlu0
    %v62 = vpop.trf.xlu0
    %v63 = vpop.trf.xlu0
    %v64 = vpack.c.bf16 %v49, %v48
    %v65 = vpack.c.bf16 %v50, %v50
    %v66 = vld [vmem:[%s1] sm:$0xf]
    %v67 = vld [vmem:[%s1 + $0x4] sm:$0xf]
    %v68 = vld [vmem:[%s1 + $0x8] sm:$0xf]
    %v69 = vld [vmem:[%s1 + $0xc] sm:$0xf]
    %v70 = vld [vmem:[%s1 + $0x10] sm:$0xf]
    %v71 = vld [vmem:[%s1 + $0x14] sm:$0xf]
    %v72 = vld [vmem:[%s1 + $0x18] sm:$0xf]
    %v73 = vld [vmem:[%s1 + $0x1c] sm:$0xf]
    %v74 = vld [vmem:[%s2] sm:$0xff]
    %v75 = vld [vmem:[%s2 + $0x8] sm:$0xff]
    %v76 = vld [vmem:[%s2 + $0x10] sm:$0xff]
    %v77 = vld [vmem:[%s2 + $0x18] sm:$0xff]
    %v78 = vld [vmem:[%s2 + $0x20] sm:$0xff]
    %v79 = vld [vmem:[%s2 + $0x28] sm:$0xff]
    %v80 = vld [vmem:[%s2 + $0x30] sm:$0xff]
    %v81 = vld [vmem:[%s2 + $0x38] sm:$0xff]
    %83 = vset.pattern.permute.xlu0 0
    %84 = vperm.xlu0 %83, %v74
    %v85 = vpop.permute.xlu0 %84
    %88 = vset.pattern.permute.xlu0 0
    %89 = vperm.xlu0 %88, %v75
    %v90 = vpop.permute.xlu0 %89
    %93 = vset.pattern.permute.xlu0 0
    %94 = vperm.xlu0 %93, %v76
    %v95 = vpop.permute.xlu0 %94
    %98 = vset.pattern.permute.xlu0 0
    %99 = vperm.xlu0 %98, %v77
    %v100 = vpop.permute.xlu0 %99
    %103 = vset.pattern.permute.xlu0 0
    %104 = vperm.xlu0 %103, %v78
    %v105 = vpop.permute.xlu0 %104
    %108 = vset.pattern.permute.xlu0 0
    %109 = vperm.xlu0 %108, %v79
    %v110 = vpop.permute.xlu0 %109
    %113 = vset.pattern.permute.xlu0 0
    %114 = vperm.xlu0 %113, %v80
    %v115 = vpop.permute.xlu0 %114
    %118 = vset.pattern.permute.xlu0 0
    %119 = vperm.xlu0 %118, %v81
    %v120 = vpop.permute.xlu0 %119
    %v130 = vunpack.c.l.b16 %v66
    %v131 = vunpack.c.l.b16 %v67
    %v132 = vunpack.c.l.b16 %v68
    %v133 = vunpack.c.l.b16 %v69
    %v134 = vunpack.c.l.b16 %v70
    %v135 = vunpack.c.l.b16 %v71
    %v136 = vunpack.c.l.b16 %v72
    %v137 = vunpack.c.l.b16 %v73
    %v138 = vpack.c.b16 %v131, %v130
    %v139 = vpack.c.b16 %v133, %v132
    %v140 = vpack.c.b16 %v135, %v134
    %v141 = vpack.c.b16 %v137, %v136
    %vm142 = vcmask 195584
    %v144 = vsel %vm142, %v138, 0
    %v147 = vsel %vm142, %v139, 0
    %v150 = vsel %vm142, %v140, 0
    %v153 = vsel %vm142, %v141, 0
    %vm155 = vcmask 1043456
    %v157 = vsel %vm155, %v65, 0
    %159 = vmatpush.bf16.msra.mxu0 0
    %160 = vmatpush.bf16.msra.mxu0 0
    %161 = vmatpush.bf16.msra.mxu0 0
    %162 = vmatpush.bf16.msra.mxu0 0
    %163 = vmatpush.bf16.msra.mxu0 0
    %164 = vmatpush.bf16.msra.mxu0 0
    %165 = vmatpush.bf16.msra.mxu0 %v157
    %166 = vmatpush.bf16.msra.mxu0 %v64
    %167 = vmatmul.bf16.gmra.mxu0 %v144
    %v168 = vpop.f32.mrf.mxu0
    %v169 = vadd.f32 %v85, %v168
    %v170 = vpop.f32.mrf.mxu0
    %v171 = vadd.f32 %v90, %v170
    %172 = vmatmul.bf16.gmra.mxu0 %v147
    %v173 = vpop.f32.mrf.mxu0
    %v174 = vadd.f32 %v95, %v173
    %v175 = vpop.f32.mrf.mxu0
    %v176 = vadd.f32 %v100, %v175
    %177 = vmatmul.bf16.gmra.mxu0 %v150
    %v178 = vpop.f32.mrf.mxu0
    %v179 = vadd.f32 %v105, %v178
    %v180 = vpop.f32.mrf.mxu0
    %v181 = vadd.f32 %v110, %v180
    %182 = vmatmul.bf16.gmra.mxu0 %v153
    %v183 = vpop.f32.mrf.mxu0
    %v184 = vadd.f32 %v115, %v183
    %v185 = vpop.f32.mrf.mxu0
    %v186 = vadd.f32 %v120, %v185
    %187 = vdwg.mxu0
    %v188 = vtanh.pop %v169
    %v189 = vtanh.pop %v171
    %v190 = vtanh.pop %v174
    %v191 = vtanh.pop %v176
    %v192 = vtanh.pop %v179
    %v193 = vtanh.pop %v181
    %v194 = vtanh.pop %v184
    %v195 = vtanh.pop %v186
    %v196 = vpack.c.bf16 %v189, %v188
    %v197 = vpack.c.bf16 %v191, %v190
    %v198 = vpack.c.bf16 %v193, %v192
    %v199 = vpack.c.bf16 %v195, %v194
    %v200 = vld [vmem:[%s3] sm:$0xf]
    %v201 = vld [vmem:[%s3 + $0x4] sm:$0xf]
    %v202 = vld [vmem:[%s3 + $0x8] sm:$0xf]
    %v203 = vld [vmem:[%s3 + $0xc] sm:$0xf]
    %v204 = vld [vmem:[%s3 + $0x10] sm:$0xf]
    %v205 = vld [vmem:[%s3 + $0x14] sm:$0xf]
    %v206 = vld [vmem:[%s3 + $0x18] sm:$0xf]
    %v207 = vld [vmem:[%s3 + $0x1c] sm:$0xf]
    %v208 = vld [vmem:[%s4] sm:$0xff]
    %v209 = vld [vmem:[%s4 + $0x8] sm:$0xff]
    %v210 = vld [vmem:[%s4 + $0x10] sm:$0xff]
    %v211 = vld [vmem:[%s4 + $0x18] sm:$0xff]
    %v212 = vld [vmem:[%s4 + $0x20] sm:$0xff]
    %v213 = vld [vmem:[%s4 + $0x28] sm:$0xff]
    %v214 = vld [vmem:[%s4 + $0x30] sm:$0xff]
    %v215 = vld [vmem:[%s4 + $0x38] sm:$0xff]
    %217 = vset.pattern.permute.xlu0 0
    %218 = vperm.xlu0 %217, %v208
    %v219 = vpop.permute.xlu0 %218
    %222 = vset.pattern.permute.xlu0 0
    %223 = vperm.xlu0 %222, %v209
    %v224 = vpop.permute.xlu0 %223
    %227 = vset.pattern.permute.xlu0 0
    %228 = vperm.xlu0 %227, %v210
    %v229 = vpop.permute.xlu0 %228
    %232 = vset.pattern.permute.xlu0 0
    %233 = vperm.xlu0 %232, %v211
    %v234 = vpop.permute.xlu0 %233
    %237 = vset.pattern.permute.xlu0 0
    %238 = vperm.xlu0 %237, %v212
    %v239 = vpop.permute.xlu0 %238
    %242 = vset.pattern.permute.xlu0 0
    %243 = vperm.xlu0 %242, %v213
    %v244 = vpop.permute.xlu0 %243
    %247 = vset.pattern.permute.xlu0 0
    %248 = vperm.xlu0 %247, %v214
    %v249 = vpop.permute.xlu0 %248
    %252 = vset.pattern.permute.xlu0 0
    %253 = vperm.xlu0 %252, %v215
    %v254 = vpop.permute.xlu0 %253
    %v264 = vunpack.c.l.b16 %v200
    %v265 = vunpack.c.l.b16 %v201
    %v266 = vunpack.c.l.b16 %v202
    %v267 = vunpack.c.l.b16 %v203
    %v268 = vunpack.c.l.b16 %v204
    %v269 = vunpack.c.l.b16 %v205
    %v270 = vunpack.c.l.b16 %v206
    %v271 = vunpack.c.l.b16 %v207
    %v272 = vpack.c.b16 %v265, %v264
    %v273 = vpack.c.b16 %v267, %v266
    %v274 = vpack.c.b16 %v269, %v268
    %v275 = vpack.c.b16 %v271, %v270
    %vm276 = vcmask 523264
    %v278 = vsel %vm276, %v272, 0
    %v281 = vsel %vm276, %v273, 0
    %v284 = vsel %vm276, %v274, 0
    %v287 = vsel %vm276, %v275, 0
    %289 = vmatpush.bf16.msra.mxu0 0
    %290 = vmatpush.bf16.msra.mxu0 0
    %291 = vmatpush.bf16.msra.mxu0 0
    %292 = vmatpush.bf16.msra.mxu0 0
    %293 = vmatpush.bf16.msra.mxu0 %v199
    %294 = vmatpush.bf16.msra.mxu0 %v198
    %295 = vmatpush.bf16.msra.mxu0 %v197
    %296 = vmatpush.bf16.msra.mxu0 %v196
    %297 = vmatmul.bf16.gmra.mxu0 %v278
    %v298 = vpop.f32.mrf.mxu0
    %v299 = vadd.f32 %v219, %v298
    %v300 = vpop.f32.mrf.mxu0
    %v301 = vadd.f32 %v224, %v300
    %302 = vmatmul.bf16.gmra.mxu0 %v281
    %v303 = vpop.f32.mrf.mxu0
    %v304 = vadd.f32 %v229, %v303
    %v305 = vpop.f32.mrf.mxu0
    %v306 = vadd.f32 %v234, %v305
    %307 = vmatmul.bf16.gmra.mxu0 %v284
    %v308 = vpop.f32.mrf.mxu0
    %v309 = vadd.f32 %v239, %v308
    %v310 = vpop.f32.mrf.mxu0
    %v311 = vadd.f32 %v244, %v310
    %312 = vmatmul.bf16.gmra.mxu0 %v287
    %v313 = vpop.f32.mrf.mxu0
    %v314 = vadd.f32 %v249, %v313
    %v315 = vpop.f32.mrf.mxu0
    %v316 = vadd.f32 %v254, %v315
    %317 = vdwg.mxu0
    %v318 = vtanh.pop %v299
    %v319 = vtanh.pop %v301
    %v320 = vtanh.pop %v304
    %v321 = vtanh.pop %v306
    %v322 = vtanh.pop %v309
    %v323 = vtanh.pop %v311
    %v324 = vtanh.pop %v314
    %v325 = vtanh.pop %v316
    %v326 = vpack.c.bf16 %v319, %v318
    %v327 = vpack.c.bf16 %v321, %v320
    %v328 = vpack.c.bf16 %v323, %v322
    %v329 = vpack.c.bf16 %v325, %v324
    %v330 = vld [vmem:[%s5] sm:$0x1]
    %v331 = vld [vmem:[#allocation2] sm:$0x1]
    %333 = vset.pattern.permute.xlu0 0
    %334 = vperm.xlu0 %333, %v331
    %v335 = vpop.permute.xlu0 %334
    %v337 = vperm.slane %v335, 0
    %v339 = vsel %vm276, %v330, 0
    %341 = vmatpush.bf16.msra.mxu0 0
    %342 = vmatpush.bf16.msra.mxu0 0
    %343 = vmatpush.bf16.msra.mxu0 0
    %344 = vmatpush.bf16.msra.mxu0 0
    %345 = vmatpush.bf16.msra.mxu0 %v329
    %346 = vmatpush.bf16.msra.mxu0 %v328
    %347 = vmatpush.bf16.msra.mxu0 %v327
    %348 = vmatpush.bf16.msra.mxu0 %v326
    %349 = vmatmul.bf16.gmra.mxu0 %v339
    %v350 = vpop.f32.mrf.mxu0
    %v351 = vadd.f32 %v337, %v350
    %v352 = vpop.f32.mrf.mxu0
    %353 = vdwg.mxu0
    %vm354 = vcmask 122880
    %355 = vst.msk [vmem:[#allocation3] sm:$0x1] %vm354, %v351
    // Predicated region
    $region30: #{tpu_custom_call.1} parent=1 // pred_check
      _
    $region31: #{tpu_custom_call.1} parent=1 // pred_check_branch
      %357 = sbr.rel (0) target = $region33
    $region32: #{tpu_custom_call.1} parent=1 // pred_region
      %359 = vsyncadd [#allocation4], 0
      %s361 = sshll.u32 [#allocation3], 4
      %s362 = int_to_ptr.vmem [resolvable:$true] %s361
      %s363 = sshll.u32 %s7, 4
      %s364 = int_to_ptr.hbm [resolvable:$true] %s363
      %366 = dma.vmem_to_hbm [thread:$0]  %s362, 16, %s364, [#allocation4]
    $region33: #{tpu_custom_call.1} parent=1 // pred_fallthru
      _
    // Predicated region
    $region34: #{tpu_custom_call.1} parent=1 // pred_check
      _
    $region35: #{tpu_custom_call.1} parent=1 // pred_check_branch
      %368 = sbr.rel (0) target = $region37
    $region36: #{tpu_custom_call.1} parent=1 // pred_region
      %370 = dma.done [#allocation4], 16
    $region37: #{tpu_custom_call.1} parent=1 // pred_fallthru
      _
    %371 = vsyncpa [#allocation4], 1

</llo_original>
